<compile_context>
chip_gen: v5e
topology: v5e:2x2
jax: 0.10.0
libtpu: 0.0.40
codegen_flags: <defaults>
</compile_context>

<pallas_src>
import functools

import jax
import jax.numpy as jnp
from jax.experimental import pallas as pl
from jax.experimental.pallas import tpu as pltpu


def _round_up(x, m):
    return ((x + m - 1) // m) * m


def _pick_tile(n_pad, candidates, min_tiles):
    """Largest candidate that divides n_pad and yields >= min_tiles tiles."""
    for c in candidates:
        if c <= n_pad and n_pad % c == 0 and n_pad // c >= min_tiles:
            return c
    return 128  # n_pad is always a multiple of 128


def _agg_kernel(apply_relu, m_resident, tile_k,
                dinv_ref, a_ref, m_ref, b_ref, o_ref):
    """o = act(dinv_row * (A @ M) + b), accumulating directly into o_ref over k."""
    k = pl.program_id(1)

    @pl.when(k == 0)
    def _():
        o_ref[...] = jnp.zeros_like(o_ref)

    if m_resident:
        # Full M lives in VMEM (constant index map); slice this k-chunk.
        off = pl.multiple_of(k * tile_k, tile_k)
        m_blk = m_ref[pl.ds(off, tile_k), :]
    else:
        m_blk = m_ref[...]

    # bf16 x bf16 -> f32 accumulate on the MXU, directly into the output block
    # (its block index (i, 0) is constant across k, so it stays VMEM-resident).
    o_ref[...] += jnp.dot(a_ref[...], m_blk, preferred_element_type=jnp.float32)

    @pl.when(k == pl.num_programs(1) - 1)
    def _():
        # Finalize once: row-scale (left D^{-1/2} factor), bias, activation.
        out = dinv_ref[...] * o_ref[...] + b_ref[...]
        if apply_relu:
            out = jnp.maximum(out, 0.0)
        o_ref[...] = out


def _aggregate(a_pad, dinv_col, m_scaled, bias_row, *, apply_relu):
    """Tiled  dinv_row * (A @ M) + b  with optional ReLU.

    a_pad:    (Np, Np) bf16   unnormalized A + I, zero-padded
    dinv_col: (Np, 1)  f32    D^{-1/2}, zero-padded
    m_scaled: (Np, Fp) bf16   dinv[:,None] * (X @ W), zero-padded, Fp % 128 == 0
    bias_row: (1, Fp)  f32
    returns   (Np, Fp) f32
    """
    n_pad = a_pad.shape[0]
    feat_pad = m_scaled.shape[1]

    # Decoupled tiles: big reduction chunks, >=2 row tiles when possible so the
    # "parallel" row axis can shard across v7x's two TensorCores.
    tile_m = _pick_tile(n_pad, (512, 256, 128), min_tiles=2)
    tile_k = _pick_tile(n_pad, (2048, 1024, 512, 256, 128), min_tiles=1)

    # Keep M VMEM-resident when small enough (constant index map => fetched
    # once).  Budget assumes up to 2 buffers; ~24 MiB keeps headroom on v7x.
    m_resident = (2 * n_pad * feat_pad * 2) <= (24 << 20)
    if m_resident:
        m_spec = pl.BlockSpec((n_pad, feat_pad), lambda i, k: (0, 0))
        m_bufs_bytes = 2 * n_pad * feat_pad * 2
    else:
        m_spec = pl.BlockSpec((tile_k, feat_pad), lambda i, k: (k, 0))
        m_bufs_bytes = 2 * tile_k * feat_pad * 2

    grid = (n_pad // tile_m, n_pad // tile_k)

    # Working-set estimate -> explicit scoped-VMEM limit (v5e default is only
    # 16 MiB; cap at 48 MiB so it is always valid on v7x's 64 MiB VMEM).
    est_vmem = (2 * tile_m * tile_k * 2          # A tiles, double-buffered, bf16
                + m_bufs_bytes                   # M buffers
                + 2 * tile_m * feat_pad * 4      # f32 output blocks
                + 2 * (tile_m * 4 + feat_pad * 4)
                + (64 << 10))
    vmem_limit = int(min(max(2 * est_vmem, 32 << 20), 48 << 20))

    cost = pl.CostEstimate(
        flops=2 * n_pad * n_pad * feat_pad,
        bytes_accessed=n_pad * n_pad * 2 + n_pad * feat_pad * (2 + 4),
        transcendentals=0,
    )

    return pl.pallas_call(
        functools.partial(_agg_kernel, apply_relu, m_resident, tile_k),
        out_shape=jax.ShapeDtypeStruct((n_pad, feat_pad), jnp.float32),
        grid_spec=pltpu.PrefetchScalarGridSpec(
            num_scalar_prefetch=0,
            grid=grid,
            in_specs=[
                pl.BlockSpec((tile_m, 1), lambda i, k: (i, 0)),        # dinv rows
                pl.BlockSpec((tile_m, tile_k), lambda i, k: (i, k)),   # A tile
                m_spec,                                                # M (resident or streamed)
                pl.BlockSpec((1, feat_pad), lambda i, k: (0, 0)),      # bias
            ],
            out_specs=pl.BlockSpec((tile_m, feat_pad), lambda i, k: (i, 0)),
        ),
        compiler_params=pltpu.CompilerParams(
            dimension_semantics=("parallel", "arbitrary"),
            vmem_limit_bytes=vmem_limit,
        ),
        cost_estimate=cost,
    )(dinv_col, a_pad, m_scaled, bias_row)


def graph_autoencoder_forward(x, edge_index, w1, b1, w2, b2):
    """x: (N, F) float32, edge_index: (2, E) int32 [src; dst]."""
    n = x.shape[0]
    hid = w1.shape[1]
    emb = w2.shape[1]

    n_pad = _round_up(n, 128)
    hid_pad = _round_up(hid, 128)   # exactly 128 lanes unless hid > 128
    emb_pad = _round_up(emb, 128)

    src, dst = edge_index[0], edge_index[1]

    # Degrees straight from the edge list (O(E)); +1 for the self-loop.
    deg = jnp.zeros((n,), jnp.float32).at[dst].add(1.0) + 1.0
    dinv = 1.0 / jnp.sqrt(deg)      # deg >= 1 always (self-loop)

    # Build A + I directly in bf16 into the padded buffer: one scatter-add with
    # the self-loop edges appended (no f32 N^2 temporaries, no separate +eye).
    loops = jnp.arange(n, dtype=dst.dtype)
    rows = jnp.concatenate([dst, loops])
    cols = jnp.concatenate([src, loops])
    ones = jnp.ones((rows.shape[0],), jnp.bfloat16)
    a_pad = jnp.zeros((n_pad, n_pad), jnp.bfloat16).at[rows, cols].add(ones)

    dinv_col = jnp.zeros((n_pad, 1), jnp.float32).at[:n, 0].set(dinv)

    # ---- Layer 1: H = relu(A_hat @ (X @ W1) + b1) ----
    xw1 = jnp.dot(x, w1)                                   # small, plain XLA
    m1 = jnp.zeros((n_pad, hid_pad), jnp.bfloat16).at[:n, :hid].set(
        (dinv[:, None] * xw1).astype(jnp.bfloat16))        # fold right D^{-1/2}
    b1_row = jnp.zeros((1, hid_pad), jnp.float32).at[0, :hid].set(b1)
    h_pad = _aggregate(a_pad, dinv_col, m1, b1_row, apply_relu=True)
    h = h_pad[:n, :hid]                                    # keep this slice!

    # ---- Layer 2: Z = A_hat @ (H @ W2) + b2 ----
    hw2 = jnp.dot(h, w2)                                   # small, plain XLA
    m2 = jnp.zeros((n_pad, emb_pad), jnp.bfloat16).at[:n, :emb].set(
        (dinv[:, None] * hw2).astype(jnp.bfloat16))
    b2_row = jnp.zeros((1, emb_pad), jnp.float32).at[0, :emb].set(b2)
    z_pad = _aggregate(a_pad, dinv_col, m2, b2_row, apply_relu=False)
    return z_pad[:n, :emb]


def _reference(x, edge_index, w1, b1, w2, b2):
    n = x.shape[0]
    src, dst = edge_index[0], edge_index[1]
    a = jnp.zeros((n, n), jnp.float32).at[dst, src].add(1.0) + jnp.eye(n)
    deg = a.sum(axis=1)
    dinv = jnp.where(deg > 0, 1.0 / jnp.sqrt(deg), 0.0)
    a_hat = dinv[:, None] * a * dinv[None, :]
    h = jnp.maximum(a_hat @ (x @ w1) + b1, 0.0)
    return a_hat @ (h @ w2) + b2


if __name__ == "__main__":
    # Small shapes: N=8 nodes, input_dim=16, hidden_dim=32, embedding_dim=8, E=16.
    N, IN_DIM, HID_DIM, EMB_DIM, E = 8, 16, 32, 8, 16

    key = jax.random.PRNGKey(0)
    kx, ke, k1, k2 = jax.random.split(key, 4)

    x = jax.random.normal(kx, (N, IN_DIM), dtype=jnp.float32)
    edge_index = jax.random.randint(ke, (2, E), 0, N, dtype=jnp.int32)

    def glorot(k, shape):
        lim = (6.0 / (shape[0] + shape[1])) ** 0.5
        return jax.random.uniform(k, shape, jnp.float32, -lim, lim)

    w1 = glorot(k1, (IN_DIM, HID_DIM))
    b1 = jnp.zeros((HID_DIM,), jnp.float32)
    w2 = glorot(k2, (HID_DIM, EMB_DIM))
    b2 = jnp.zeros((EMB_DIM,), jnp.float32)

    z = graph_autoencoder_forward(x, edge_index, w1, b1, w2, b2)
    z = jax.block_until_ready(z)

    z_ref = _reference(x, edge_index, w1, b1, w2, b2)
    assert z.shape == (N, EMB_DIM)
    # bf16 matmul operands with f32 accumulation -> ~1e-2-level deviation vs f32 ref.
    assert jnp.allclose(z, z_ref, atol=5e-2, rtol=5e-2), float(
        jnp.max(jnp.abs(z - z_ref)))

    print("KERNEL_OK")
</pallas_src>

<mosaic_0001>
module attributes {stable_mosaic.version = 11 : i64} {
  func.func @_agg_kernel(%arg0: i32, %arg1: i32, %arg2: memref<128x1xf32, #tpu.memory_space<vmem>>, %arg3: memref<128x128xbf16, #tpu.memory_space<vmem>>, %arg4: memref<128x128xbf16, #tpu.memory_space<vmem>>, %arg5: memref<1x128xf32, #tpu.memory_space<vmem>>, %arg6: memref<128x128xf32, #tpu.memory_space<vmem>>) attributes {dimension_semantics = [#tpu.dimension_semantics<parallel>, #tpu.dimension_semantics<arbitrary>], iteration_bounds = array<i64: 1, 1>, scalar_prefetch = 0 : i64, scratch_operands = 0 : i64, tpu.core_type = #tpu.core_type<tc>, window_params = [{transform_indices = @transform_0, window_bounds = array<i64: 128, 1>}, {transform_indices = @transform_1, window_bounds = array<i64: 128, 128>}, {pipeline_mode = #tpu.pipeline_mode<synchronous>, transform_indices = @transform_2, window_bounds = array<i64: 128, 128>}, {pipeline_mode = #tpu.pipeline_mode<synchronous>, transform_indices = @transform_3, window_bounds = array<i64: 1, 128>}, {transform_indices = @transform_4, window_bounds = array<i64: 128, 128>}]} {
    %c0_i32 = arith.constant 0 : i32
    %0 = arith.cmpi eq, %arg1, %c0_i32 : i32
    %1 = arith.extui %0 : i1 to i32
    %c0_i32_0 = arith.constant 0 : i32
    %2 = arith.cmpi ne, %1, %c0_i32_0 : i32
    scf.if %2 {
      %cst_9 = arith.constant 0.000000e+00 : f32
      %15 = vector.broadcast %cst_9 : f32 to vector<128x128xf32>
      %c0_10 = arith.constant 0 : index
      %c0_11 = arith.constant 0 : index
      %16 = vector.load %arg6[%c0_10, %c0_11] : memref<128x128xf32, #tpu.memory_space<vmem>>, vector<128x128xf32>
      tpu.vector_store %arg6[%c0_10, %c0_11], %15 {strides = array<i32>} : memref<128x128xf32, #tpu.memory_space<vmem>>, vector<128x128xf32>,
    } else {
    }
    %c128_i32 = arith.constant 128 : i32
    %3 = arith.muli %arg1, %c128_i32 : i32
    %4 = tpu.assume_multiple %3, 128 : i32
    %5 = arith.index_cast %4 : i32 to index
    %c0 = arith.constant 0 : index
    %6 = vector.load %arg4[%5, %c0] : memref<128x128xbf16, #tpu.memory_space<vmem>>, vector<128x128xbf16>
    %c0_1 = arith.constant 0 : index
    %c0_2 = arith.constant 0 : index
    %7 = vector.load %arg6[%c0_1, %c0_2] : memref<128x128xf32, #tpu.memory_space<vmem>>, vector<128x128xf32>
    %c0_3 = arith.constant 0 : index
    %c0_4 = arith.constant 0 : index
    %8 = vector.load %arg3[%c0_3, %c0_4] : memref<128x128xbf16, #tpu.memory_space<vmem>>, vector<128x128xbf16>
    %cst = arith.constant dense<0.000000e+00> : vector<128x128xf32>
    %9 = tpu.matmul %8, %6, %cst {dimension_numbers = #tpu.dot_dimension_numbers<[1], [0], [0], [1], [0, 0, 1, 1], [], []>} : vector<128x128xbf16>, vector<128x128xbf16>, vector<128x128xf32> -> vector<128x128xf32>
    %10 = arith.addf %7, %9 : vector<128x128xf32>
    %c0_5 = arith.constant 0 : index
    %c0_6 = arith.constant 0 : index
    %11 = vector.load %arg6[%c0_5, %c0_6] : memref<128x128xf32, #tpu.memory_space<vmem>>, vector<128x128xf32>
    tpu.vector_store %arg6[%c0_5, %c0_6], %10 {strides = array<i32>} : memref<128x128xf32, #tpu.memory_space<vmem>>, vector<128x128xf32>,
    %c0_i32_7 = arith.constant 0 : i32
    %12 = arith.cmpi eq, %arg1, %c0_i32_7 : i32
    %13 = arith.extui %12 : i1 to i32
    %c0_i32_8 = arith.constant 0 : i32
    %14 = arith.cmpi ne, %13, %c0_i32_8 : i32
    scf.if %14 {
      %c0_9 = arith.constant 0 : index
      %c0_10 = arith.constant 0 : index
      %15 = vector.load %arg2[%c0_9, %c0_10] : memref<128x1xf32, #tpu.memory_space<vmem>>, vector<128x1xf32>
      %c0_11 = arith.constant 0 : index
      %c0_12 = arith.constant 0 : index
      %16 = vector.load %arg6[%c0_11, %c0_12] : memref<128x128xf32, #tpu.memory_space<vmem>>, vector<128x128xf32>
      %17 = vector.broadcast %15 : vector<128x1xf32> to vector<128x128xf32>
      %18 = arith.mulf %17, %16 : vector<128x128xf32>
      %c0_13 = arith.constant 0 : index
      %c0_14 = arith.constant 0 : index
      %19 = vector.load %arg5[%c0_13, %c0_14] : memref<1x128xf32, #tpu.memory_space<vmem>>, vector<1x128xf32>
      %20 = vector.broadcast %19 : vector<1x128xf32> to vector<128x128xf32>
      %21 = arith.addf %18, %20 : vector<128x128xf32>
      %cst_15 = arith.constant 0.000000e+00 : f32
      %22 = vector.broadcast %cst_15 : f32 to vector<128x128xf32>
      %23 = arith.maximumf %21, %22 : vector<128x128xf32>
      %c0_16 = arith.constant 0 : index
      %c0_17 = arith.constant 0 : index
      %24 = vector.load %arg6[%c0_16, %c0_17] : memref<128x128xf32, #tpu.memory_space<vmem>>, vector<128x128xf32>
      tpu.vector_store %arg6[%c0_16, %c0_17], %23 {strides = array<i32>} : memref<128x128xf32, #tpu.memory_space<vmem>>, vector<128x128xf32>,
    } else {
    }
    return
  }
  func.func @transform_0(%arg0: i32, %arg1: i32) -> (i32, i32) {
    %c0_i32 = arith.constant 0 : i32
    %c0_i32_0 = arith.constant 0 : i32
    return %arg0, %c0_i32 : i32, i32
  }
  func.func @transform_1(%arg0: i32, %arg1: i32) -> (i32, i32) {
    %c0_i32 = arith.constant 0 : i32
    return %arg0, %arg1 : i32, i32
  }
  func.func @transform_2(%arg0: i32, %arg1: i32) -> (i32, i32) {
    %c0_i32 = arith.constant 0 : i32
    %c0_i32_0 = arith.constant 0 : i32
    %c0_i32_1 = arith.constant 0 : i32
    return %c0_i32, %c0_i32_0 : i32, i32
  }
  func.func @transform_3(%arg0: i32, %arg1: i32) -> (i32, i32) {
    %c0_i32 = arith.constant 0 : i32
    %c0_i32_0 = arith.constant 0 : i32
    %c0_i32_1 = arith.constant 0 : i32
    return %c0_i32, %c0_i32_0 : i32, i32
  }
  func.func @transform_4(%arg0: i32, %arg1: i32) -> (i32, i32) {
    %c0_i32 = arith.constant 0 : i32
    %c0_i32_0 = arith.constant 0 : i32
    return %arg0, %c0_i32 : i32, i32
  }
}

</mosaic_0001>

<llo_original>
// kernel: tpu_custom_call.1
$region0: #{tpu_custom_call.1}
  #allocation0 [shape = 'u32[]', space=smem, size = 0x4, offset = 0x4, fixed_abs, tag = 'smem constant byte address 0x4 - core index']
  #allocation1 [shape = 'u32[72,128]{1,0:T(1,128)}', space=vmem, size = 0x9000, scoped, tag = 'internal scratch']
  %s0 = inlined_call_operand.vmem [shape: f32[128,1], index: 0, kind: input, shape index: {}]
  %s1 = inlined_call_operand.vmem [shape: bf16[128,128], index: 1, kind: input, shape index: {}]
  %s2 = inlined_call_operand.vmem [shape: bf16[128,128], index: 2, kind: input, shape index: {}]
  %s3 = inlined_call_operand.vmem [shape: f32[1,128], index: 3, kind: input, shape index: {}]
  %s4 = inlined_call_operand.hbm [shape: f32[128,128], index: 4, kind: output, shape index: {}]
  %s5 = sld [smem:[#allocation0]]
  $region34: #{tpu_custom_call.1} parent=0
    _
  %s7 = ssub.s32 1, %s5
  %s8 = scalar_select 0, %s7, %s5
  $region1: #{tpu_custom_call.1} parent=0
    #allocation2 [shape = 'u8[65536]{0}', space=vmem, size = 0x10000, scoped, tag = 'output window, operand 0, single buffered']
    #allocation3 [shape = 's32[1]{0}', space=sflag, size = 0x4, scoped, tag = 'scoped memory for tpu_custom_call.1']
    %9 = vsyncpa [#allocation3], 0
    // Predicated region
    $region2: #{tpu_custom_call.1} parent=1 // pred_check
      _
    $region3: #{tpu_custom_call.1} parent=1 // pred_check_branch
      %11 = sbr.rel (0) target = $region5
    $region4: #{tpu_custom_call.1} parent=1 // pred_region
      _
    $region5: #{tpu_custom_call.1} parent=1 // pred_fallthru
      _
    // Predicated region
    $region6: #{tpu_custom_call.1} parent=1 // pred_check
      _
    $region7: #{tpu_custom_call.1} parent=1 // pred_check_branch
      %13 = sbr.rel (0) target = $region9
    $region8: #{tpu_custom_call.1} parent=1 // pred_region
      _
    $region9: #{tpu_custom_call.1} parent=1 // pred_fallthru
      _
    // Predicated region
    $region10: #{tpu_custom_call.1} parent=1 // pred_check
      _
    $region11: #{tpu_custom_call.1} parent=1 // pred_check_branch
      %15 = sbr.rel (0) target = $region13
    $region12: #{tpu_custom_call.1} parent=1 // pred_region
      _
    $region13: #{tpu_custom_call.1} parent=1 // pred_fallthru
      _
    // Predicated region
    $region14: #{tpu_custom_call.1} parent=1 // pred_check
      _
    $region15: #{tpu_custom_call.1} parent=1 // pred_check_branch
      %17 = sbr.rel (0) target = $region17
    $region16: #{tpu_custom_call.1} parent=1 // pred_region
      _
    $region17: #{tpu_custom_call.1} parent=1 // pred_fallthru
      _
    %p18 = scmp.eq.s32.totalorder 0, 0
    // Predicated region
    $region18: #{tpu_custom_call.1} parent=1 // pred_check
      %p19 = pneg %p18
    $region19: #{tpu_custom_call.1} parent=1 // pred_check_branch
      %21 = sbr.rel (%p19) target = $region21
    $region20: #{tpu_custom_call.1} parent=1 // pred_region
      %22 = vst [vmem:[#allocation2] sm:$0xff] 0.0
      %23 = vst [vmem:[#allocation2 + $0x8] sm:$0xff] 0.0
      %24 = vst [vmem:[#allocation2 + $0x10] sm:$0xff] 0.0
      %25 = vst [vmem:[#allocation2 + $0x18] sm:$0xff] 0.0
      %26 = vst [vmem:[#allocation2 + $0x20] sm:$0xff] 0.0
      %27 = vst [vmem:[#allocation2 + $0x28] sm:$0xff] 0.0
      %28 = vst [vmem:[#allocation2 + $0x30] sm:$0xff] 0.0
      %29 = vst [vmem:[#allocation2 + $0x38] sm:$0xff] 0.0
      %30 = vst [vmem:[#allocation2 + $0x40] sm:$0xff] 0.0
      %31 = vst [vmem:[#allocation2 + $0x48] sm:$0xff] 0.0
      %32 = vst [vmem:[#allocation2 + $0x50] sm:$0xff] 0.0
      %33 = vst [vmem:[#allocation2 + $0x58] sm:$0xff] 0.0
      %34 = vst [vmem:[#allocation2 + $0x60] sm:$0xff] 0.0
      %35 = vst [vmem:[#allocation2 + $0x68] sm:$0xff] 0.0
      %36 = vst [vmem:[#allocation2 + $0x70] sm:$0xff] 0.0
      %37 = vst [vmem:[#allocation2 + $0x78] sm:$0xff] 0.0
    $region21: #{tpu_custom_call.1} parent=1 // pred_fallthru
      _
    %s38 = smul.u32 0, 128
    %s39 = sshra.s32 %s38, 3
    %s40 = sand.u32 %s38, 7
    %s41 = smul.addr %s39, 4
    %s42 = scalar_lea.vmem %s2, %s41
    %v43 = vld [vmem:[%s42] sm:$0xf]
    %v44 = vld [vmem:[%s42 + $0x4] sm:$0xf]
    %v45 = vld [vmem:[%s42 + $0x8] sm:$0xf]
    %v46 = vld [vmem:[%s42 + $0xc] sm:$0xf]
    %v47 = vld [vmem:[%s42 + $0x10] sm:$0xf]
    %v48 = vld [vmem:[%s42 + $0x14] sm:$0xf]
    %v49 = vld [vmem:[%s42 + $0x18] sm:$0xf]
    %v50 = vld [vmem:[%s42 + $0x1c] sm:$0xf]
    %v51 = vld [vmem:[%s42 + $0x20] sm:$0xf]
    %v52 = vld [vmem:[%s42 + $0x24] sm:$0xf]
    %v53 = vld [vmem:[%s42 + $0x28] sm:$0xf]
    %v54 = vld [vmem:[%s42 + $0x2c] sm:$0xf]
    %v55 = vld [vmem:[%s42 + $0x30] sm:$0xf]
    %v56 = vld [vmem:[%s42 + $0x34] sm:$0xf]
    %v57 = vld [vmem:[%s42 + $0x38] sm:$0xf]
    %v58 = vld [vmem:[%s42 + $0x3c] sm:$0xf]
    %v59 = vld [vmem:[#allocation2] sm:$0xff]
    %v60 = vld [vmem:[#allocation2 + $0x8] sm:$0xff]
    %v61 = vld [vmem:[#allocation2 + $0x10] sm:$0xff]
    %v62 = vld [vmem:[#allocation2 + $0x18] sm:$0xff]
    %v63 = vld [vmem:[#allocation2 + $0x20] sm:$0xff]
    %v64 = vld [vmem:[#allocation2 + $0x28] sm:$0xff]
    %v65 = vld [vmem:[#allocation2 + $0x30] sm:$0xff]
    %v66 = vld [vmem:[#allocation2 + $0x38] sm:$0xff]
    %v67 = vld [vmem:[#allocation2 + $0x40] sm:$0xff]
    %v68 = vld [vmem:[#allocation2 + $0x48] sm:$0xff]
    %v69 = vld [vmem:[#allocation2 + $0x50] sm:$0xff]
    %v70 = vld [vmem:[#allocation2 + $0x58] sm:$0xff]
    %v71 = vld [vmem:[#allocation2 + $0x60] sm:$0xff]
    %v72 = vld [vmem:[#allocation2 + $0x68] sm:$0xff]
    %v73 = vld [vmem:[#allocation2 + $0x70] sm:$0xff]
    %v74 = vld [vmem:[#allocation2 + $0x78] sm:$0xff]
    %v75 = vld [vmem:[%s1] sm:$0xf]
    %v76 = vld [vmem:[%s1 + $0x4] sm:$0xf]
    %v77 = vld [vmem:[%s1 + $0x8] sm:$0xf]
    %v78 = vld [vmem:[%s1 + $0xc] sm:$0xf]
    %v79 = vld [vmem:[%s1 + $0x10] sm:$0xf]
    %v80 = vld [vmem:[%s1 + $0x14] sm:$0xf]
    %v81 = vld [vmem:[%s1 + $0x18] sm:$0xf]
    %v82 = vld [vmem:[%s1 + $0x1c] sm:$0xf]
    %v83 = vld [vmem:[%s1 + $0x20] sm:$0xf]
    %v84 = vld [vmem:[%s1 + $0x24] sm:$0xf]
    %v85 = vld [vmem:[%s1 + $0x28] sm:$0xf]
    %v86 = vld [vmem:[%s1 + $0x2c] sm:$0xf]
    %v87 = vld [vmem:[%s1 + $0x30] sm:$0xf]
    %v88 = vld [vmem:[%s1 + $0x34] sm:$0xf]
    %v89 = vld [vmem:[%s1 + $0x38] sm:$0xf]
    %v90 = vld [vmem:[%s1 + $0x3c] sm:$0xf]
    %v107 = vunpack.c.l.b16 %v75
    %v108 = vunpack.c.l.b16 %v76
    %v109 = vunpack.c.l.b16 %v77
    %v110 = vunpack.c.l.b16 %v78
    %v111 = vunpack.c.l.b16 %v79
    %v112 = vunpack.c.l.b16 %v80
    %v113 = vunpack.c.l.b16 %v81
    %v114 = vunpack.c.l.b16 %v82
    %v115 = vunpack.c.l.b16 %v83
    %v116 = vunpack.c.l.b16 %v84
    %v117 = vunpack.c.l.b16 %v85
    %v118 = vunpack.c.l.b16 %v86
    %v119 = vunpack.c.l.b16 %v87
    %v120 = vunpack.c.l.b16 %v88
    %v121 = vunpack.c.l.b16 %v89
    %v122 = vunpack.c.l.b16 %v90
    %v123 = vpack.c.b16 %v108, %v107
    %v124 = vpack.c.b16 %v110, %v109
    %v125 = vpack.c.b16 %v112, %v111
    %v126 = vpack.c.b16 %v114, %v113
    %v127 = vpack.c.b16 %v116, %v115
    %v128 = vpack.c.b16 %v118, %v117
    %v129 = vpack.c.b16 %v120, %v119
    %v130 = vpack.c.b16 %v122, %v121
    %v155 = vunpack.c.l.b16 %v43
    %v156 = vunpack.c.l.b16 %v44
    %v157 = vunpack.c.l.b16 %v45
    %v158 = vunpack.c.l.b16 %v46
    %v159 = vunpack.c.l.b16 %v47
    %v160 = vunpack.c.l.b16 %v48
    %v161 = vunpack.c.l.b16 %v49
    %v162 = vunpack.c.l.b16 %v50
    %v163 = vunpack.c.l.b16 %v51
    %v164 = vunpack.c.l.b16 %v52
    %v165 = vunpack.c.l.b16 %v53
    %v166 = vunpack.c.l.b16 %v54
    %v167 = vunpack.c.l.b16 %v55
    %v168 = vunpack.c.l.b16 %v56
    %v169 = vunpack.c.l.b16 %v57
    %v170 = vunpack.c.l.b16 %v58
    %v171 = vpack.c.b16 %v156, %v155
    %v172 = vpack.c.b16 %v158, %v157
    %v173 = vpack.c.b16 %v160, %v159
    %v174 = vpack.c.b16 %v162, %v161
    %v175 = vpack.c.b16 %v164, %v163
    %v176 = vpack.c.b16 %v166, %v165
    %v177 = vpack.c.b16 %v168, %v167
    %v178 = vpack.c.b16 %v170, %v169
    %187 = vmatpush.bf16.msra.mxu0 %v178
    %188 = vmatpush.bf16.msra.mxu0 %v177
    %189 = vmatpush.bf16.msra.mxu0 %v176
    %190 = vmatpush.bf16.msra.mxu0 %v175
    %191 = vmatpush.bf16.msra.mxu0 %v174
    %192 = vmatpush.bf16.msra.mxu0 %v173
    %193 = vmatpush.bf16.msra.mxu0 %v172
    %194 = vmatpush.bf16.msra.mxu0 %v171
    %195 = vmatmul.bf16.gmra.mxu0 %v123
    %v196 = vpop.f32.mrf.mxu0
    %v197 = vadd.f32 0.0, %v196
    %v198 = vpop.f32.mrf.mxu0
    %v199 = vadd.f32 0.0, %v198
    %200 = vmatmul.bf16.gmra.mxu0 %v124
    %v201 = vpop.f32.mrf.mxu0
    %v202 = vadd.f32 0.0, %v201
    %v203 = vpop.f32.mrf.mxu0
    %v204 = vadd.f32 0.0, %v203
    %205 = vmatmul.bf16.gmra.mxu0 %v125
    %v206 = vpop.f32.mrf.mxu0
    %v207 = vadd.f32 0.0, %v206
    %v208 = vpop.f32.mrf.mxu0
    %v209 = vadd.f32 0.0, %v208
    %210 = vmatmul.bf16.gmra.mxu0 %v126
    %v211 = vpop.f32.mrf.mxu0
    %v212 = vadd.f32 0.0, %v211
    %v213 = vpop.f32.mrf.mxu0
    %v214 = vadd.f32 0.0, %v213
    %215 = vmatmul.bf16.gmra.mxu0 %v127
    %v216 = vpop.f32.mrf.mxu0
    %v217 = vadd.f32 0.0, %v216
    %v218 = vpop.f32.mrf.mxu0
    %v219 = vadd.f32 0.0, %v218
    %220 = vmatmul.bf16.gmra.mxu0 %v128
    %v221 = vpop.f32.mrf.mxu0
    %v222 = vadd.f32 0.0, %v221
    %v223 = vpop.f32.mrf.mxu0
    %v224 = vadd.f32 0.0, %v223
    %225 = vmatmul.bf16.gmra.mxu0 %v129
    %v226 = vpop.f32.mrf.mxu0
    %v227 = vadd.f32 0.0, %v226
    %v228 = vpop.f32.mrf.mxu0
    %v229 = vadd.f32 0.0, %v228
    %230 = vmatmul.bf16.gmra.mxu0 %v130
    %v231 = vpop.f32.mrf.mxu0
    %v232 = vadd.f32 0.0, %v231
    %v233 = vpop.f32.mrf.mxu0
    %v234 = vadd.f32 0.0, %v233
    %235 = vdwg.mxu0
    %v236 = vadd.f32 %v59, %v197
    %v237 = vadd.f32 %v60, %v199
    %v238 = vadd.f32 %v61, %v202
    %v239 = vadd.f32 %v62, %v204
    %v240 = vadd.f32 %v63, %v207
    %v241 = vadd.f32 %v64, %v209
    %v242 = vadd.f32 %v65, %v212
    %v243 = vadd.f32 %v66, %v214
    %v244 = vadd.f32 %v67, %v217
    %v245 = vadd.f32 %v68, %v219
    %v246 = vadd.f32 %v69, %v222
    %v247 = vadd.f32 %v70, %v224
    %v248 = vadd.f32 %v71, %v227
    %v249 = vadd.f32 %v72, %v229
    %v250 = vadd.f32 %v73, %v232
    %v251 = vadd.f32 %v74, %v234
    %252 = vst [vmem:[#allocation2] sm:$0xff] %v236
    %253 = vst [vmem:[#allocation2 + $0x8] sm:$0xff] %v237
    %254 = vst [vmem:[#allocation2 + $0x10] sm:$0xff] %v238
    %255 = vst [vmem:[#allocation2 + $0x18] sm:$0xff] %v239
    %256 = vst [vmem:[#allocation2 + $0x20] sm:$0xff] %v240
    %257 = vst [vmem:[#allocation2 + $0x28] sm:$0xff] %v241
    %258 = vst [vmem:[#allocation2 + $0x30] sm:$0xff] %v242
    %259 = vst [vmem:[#allocation2 + $0x38] sm:$0xff] %v243
    %260 = vst [vmem:[#allocation2 + $0x40] sm:$0xff] %v244
    %261 = vst [vmem:[#allocation2 + $0x48] sm:$0xff] %v245
    %262 = vst [vmem:[#allocation2 + $0x50] sm:$0xff] %v246
    %263 = vst [vmem:[#allocation2 + $0x58] sm:$0xff] %v247
    %264 = vst [vmem:[#allocation2 + $0x60] sm:$0xff] %v248
    %265 = vst [vmem:[#allocation2 + $0x68] sm:$0xff] %v249
    %266 = vst [vmem:[#allocation2 + $0x70] sm:$0xff] %v250
    %267 = vst [vmem:[#allocation2 + $0x78] sm:$0xff] %v251
    // Predicated region
    $region22: #{tpu_custom_call.1} parent=1 // pred_check
      %p268 = pneg %p18
    $region23: #{tpu_custom_call.1} parent=1 // pred_check_branch
      %270 = sbr.rel (%p268) target = $region25
    $region24: #{tpu_custom_call.1} parent=1 // pred_region
      %v271 = vld [vmem:[%s0] sm:$0xff]
      %v272 = vld [vmem:[%s0 + $0x8] sm:$0xff]
      %v273 = vld [vmem:[%s0 + $0x10] sm:$0xff]
      %v274 = vld [vmem:[%s0 + $0x18] sm:$0xff]
      %v275 = vld [vmem:[%s0 + $0x20] sm:$0xff]
      %v276 = vld [vmem:[%s0 + $0x28] sm:$0xff]
      %v277 = vld [vmem:[%s0 + $0x30] sm:$0xff]
      %v278 = vld [vmem:[%s0 + $0x38] sm:$0xff]
      %v279 = vld [vmem:[%s0 + $0x40] sm:$0xff]
      %v280 = vld [vmem:[%s0 + $0x48] sm:$0xff]
      %v281 = vld [vmem:[%s0 + $0x50] sm:$0xff]
      %v282 = vld [vmem:[%s0 + $0x58] sm:$0xff]
      %v283 = vld [vmem:[%s0 + $0x60] sm:$0xff]
      %v284 = vld [vmem:[%s0 + $0x68] sm:$0xff]
      %v285 = vld [vmem:[%s0 + $0x70] sm:$0xff]
      %v286 = vld [vmem:[%s0 + $0x78] sm:$0xff]
      %v287 = vld [vmem:[#allocation2] sm:$0xff]
      %v288 = vld [vmem:[#allocation2 + $0x8] sm:$0xff]
      %v289 = vld [vmem:[#allocation2 + $0x10] sm:$0xff]
      %v290 = vld [vmem:[#allocation2 + $0x18] sm:$0xff]
      %v291 = vld [vmem:[#allocation2 + $0x20] sm:$0xff]
      %v292 = vld [vmem:[#allocation2 + $0x28] sm:$0xff]
      %v293 = vld [vmem:[#allocation2 + $0x30] sm:$0xff]
      %v294 = vld [vmem:[#allocation2 + $0x38] sm:$0xff]
      %v295 = vld [vmem:[#allocation2 + $0x40] sm:$0xff]
      %v296 = vld [vmem:[#allocation2 + $0x48] sm:$0xff]
      %v297 = vld [vmem:[#allocation2 + $0x50] sm:$0xff]
      %v298 = vld [vmem:[#allocation2 + $0x58] sm:$0xff]
      %v299 = vld [vmem:[#allocation2 + $0x60] sm:$0xff]
      %v300 = vld [vmem:[#allocation2 + $0x68] sm:$0xff]
      %v301 = vld [vmem:[#allocation2 + $0x70] sm:$0xff]
      %v302 = vld [vmem:[#allocation2 + $0x78] sm:$0xff]
      %304 = vset.pattern.permute.xlu0 0
      %305 = vperm.xlu0 %304, %v271
      %v306 = vpop.permute.xlu0 %305
      %309 = vset.pattern.permute.xlu0 0
      %310 = vperm.xlu0 %309, %v272
      %v311 = vpop.permute.xlu0 %310
      %314 = vset.pattern.permute.xlu0 0
      %315 = vperm.xlu0 %314, %v273
      %v316 = vpop.permute.xlu0 %315
      %319 = vset.pattern.permute.xlu0 0
      %320 = vperm.xlu0 %319, %v274
      %v321 = vpop.permute.xlu0 %320
      %324 = vset.pattern.permute.xlu0 0
      %325 = vperm.xlu0 %324, %v275
      %v326 = vpop.permute.xlu0 %325
      %329 = vset.pattern.permute.xlu0 0
      %330 = vperm.xlu0 %329, %v276
      %v331 = vpop.permute.xlu0 %330
      %334 = vset.pattern.permute.xlu0 0
      %335 = vperm.xlu0 %334, %v277
      %v336 = vpop.permute.xlu0 %335
      %339 = vset.pattern.permute.xlu0 0
      %340 = vperm.xlu0 %339, %v278
      %v341 = vpop.permute.xlu0 %340
      %344 = vset.pattern.permute.xlu0 0
      %345 = vperm.xlu0 %344, %v279
      %v346 = vpop.permute.xlu0 %345
      %349 = vset.pattern.permute.xlu0 0
      %350 = vperm.xlu0 %349, %v280
      %v351 = vpop.permute.xlu0 %350
      %354 = vset.pattern.permute.xlu0 0
      %355 = vperm.xlu0 %354, %v281
      %v356 = vpop.permute.xlu0 %355
      %359 = vset.pattern.permute.xlu0 0
      %360 = vperm.xlu0 %359, %v282
      %v361 = vpop.permute.xlu0 %360
      %364 = vset.pattern.permute.xlu0 0
      %365 = vperm.xlu0 %364, %v283
      %v366 = vpop.permute.xlu0 %365
      %369 = vset.pattern.permute.xlu0 0
      %370 = vperm.xlu0 %369, %v284
      %v371 = vpop.permute.xlu0 %370
      %374 = vset.pattern.permute.xlu0 0
      %375 = vperm.xlu0 %374, %v285
      %v376 = vpop.permute.xlu0 %375
      %379 = vset.pattern.permute.xlu0 0
      %380 = vperm.xlu0 %379, %v286
      %v381 = vpop.permute.xlu0 %380
      %v383 = vmul.f32 %v306, %v287
      %v384 = vmul.f32 %v311, %v288
      %v385 = vmul.f32 %v316, %v289
      %v386 = vmul.f32 %v321, %v290
      %v387 = vmul.f32 %v326, %v291
      %v388 = vmul.f32 %v331, %v292
      %v389 = vmul.f32 %v336, %v293
      %v390 = vmul.f32 %v341, %v294
      %v391 = vmul.f32 %v346, %v295
      %v392 = vmul.f32 %v351, %v296
      %v393 = vmul.f32 %v356, %v297
      %v394 = vmul.f32 %v361, %v298
      %v395 = vmul.f32 %v366, %v299
      %v396 = vmul.f32 %v371, %v300
      %v397 = vmul.f32 %v376, %v301
      %v398 = vmul.f32 %v381, %v302
      %v399 = vld [vmem:[%s3] sm:$0x1]
      %v401 = vperm.slane %v399, 0
      %v403 = vadd.f32 %v383, %v401
      %v404 = vadd.f32 %v384, %v401
      %v405 = vadd.f32 %v385, %v401
      %v406 = vadd.f32 %v386, %v401
      %v407 = vadd.f32 %v387, %v401
      %v408 = vadd.f32 %v388, %v401
      %v409 = vadd.f32 %v389, %v401
      %v410 = vadd.f32 %v390, %v401
      %v411 = vadd.f32 %v391, %v401
      %v412 = vadd.f32 %v392, %v401
      %v413 = vadd.f32 %v393, %v401
      %v414 = vadd.f32 %v394, %v401
      %v415 = vadd.f32 %v395, %v401
      %v416 = vadd.f32 %v396, %v401
      %v417 = vadd.f32 %v397, %v401
      %v418 = vadd.f32 %v398, %v401
      %v419 = vmax.f32 %v403, 0.0
      %v420 = vmax.f32 %v404, 0.0
      %v421 = vmax.f32 %v405, 0.0
      %v422 = vmax.f32 %v406, 0.0
      %v423 = vmax.f32 %v407, 0.0
      %v424 = vmax.f32 %v408, 0.0
      %v425 = vmax.f32 %v409, 0.0
      %v426 = vmax.f32 %v410, 0.0
      %v427 = vmax.f32 %v411, 0.0
      %v428 = vmax.f32 %v412, 0.0
      %v429 = vmax.f32 %v413, 0.0
      %v430 = vmax.f32 %v414, 0.0
      %v431 = vmax.f32 %v415, 0.0
      %v432 = vmax.f32 %v416, 0.0
      %v433 = vmax.f32 %v417, 0.0
      %v434 = vmax.f32 %v418, 0.0
      %435 = vst [vmem:[#allocation2] sm:$0xff] %v419
      %436 = vst [vmem:[#allocation2 + $0x8] sm:$0xff] %v420
      %437 = vst [vmem:[#allocation2 + $0x10] sm:$0xff] %v421
      %438 = vst [vmem:[#allocation2 + $0x18] sm:$0xff] %v422
      %439 = vst [vmem:[#allocation2 + $0x20] sm:$0xff] %v423
      %440 = vst [vmem:[#allocation2 + $0x28] sm:$0xff] %v424
      %441 = vst [vmem:[#allocation2 + $0x30] sm:$0xff] %v425
      %442 = vst [vmem:[#allocation2 + $0x38] sm:$0xff] %v426
      %443 = vst [vmem:[#allocation2 + $0x40] sm:$0xff] %v427
      %444 = vst [vmem:[#allocation2 + $0x48] sm:$0xff] %v428
      %445 = vst [vmem:[#allocation2 + $0x50] sm:$0xff] %v429
      %446 = vst [vmem:[#allocation2 + $0x58] sm:$0xff] %v430
      %447 = vst [vmem:[#allocation2 + $0x60] sm:$0xff] %v431
      %448 = vst [vmem:[#allocation2 + $0x68] sm:$0xff] %v432
      %449 = vst [vmem:[#allocation2 + $0x70] sm:$0xff] %v433
      %450 = vst [vmem:[#allocation2 + $0x78] sm:$0xff] %v434
    $region25: #{tpu_custom_call.1} parent=1 // pred_fallthru
      _
    // Predicated region
    $region26: #{tpu_custom_call.1} parent=1 // pred_check
      _
    $region27: #{tpu_custom_call.1} parent=1 // pred_check_branch
      %452 = sbr.rel (0) target = $region29
    $region28: #{tpu_custom_call.1} parent=1 // pred_region
      %454 = vsyncadd [#allocation3], 0
      %s455 = sshll.u32 [#allocation2], 4
      %s456 = int_to_ptr.vmem [resolvable:$true] %s455
      %s457 = sshll.u32 %s4, 4
      %s458 = int_to_ptr.hbm [resolvable:$true] %s457
      %463 = dma.vmem_to_hbm [thread:$0]  %s456, 2048, %s458, [#allocation3], 128, 128, 8
    $region29: #{tpu_custom_call.1} parent=1 // pred_fallthru
      _
    // Predicated region
    $region30: #{tpu_custom_call.1} parent=1 // pred_check
      _
    $region31: #{tpu_custom_call.1} parent=1 // pred_check_branch
      %465 = sbr.rel (0) target = $region33
    $region32: #{tpu_custom_call.1} parent=1 // pred_region
      %467 = dma.done [#allocation3], 2048
    $region33: #{tpu_custom_call.1} parent=1 // pred_fallthru
      _
    %468 = vsyncpa [#allocation3], 1

</llo_original>
